<compile_context>
chip_gen: v5e
topology: v5e:2x2
jax: 0.10.0
libtpu: 0.0.40
codegen_flags: <defaults>
</compile_context>

<pallas_src>
import functools

import jax
import jax.numpy as jnp
from jax.experimental import pallas as pl
from jax.experimental.pallas import tpu as pltpu


def _full_spec(shape):
    """Whole-array-in-VMEM BlockSpec for a grid of (1,)."""
    nd = len(shape)
    return pl.BlockSpec(shape, lambda i, _nd=nd: (0,) * _nd)


# ----------------------------------------------------------------------------
# Fused kernel: encode -> class softmax/argmax -> reparameterize -> decode
#               -> squared-error reduction
# ----------------------------------------------------------------------------
def _vae_kernel(C, L, tau,
                x_ref, h1_ref, eps_ref, temp_ref, expand_ref,
                wml_ref, bml_ref, wc_ref, bc_ref,
                w3_ref, b3_ref, w4_ref, b4_ref,
                mulv_ref, prob_ref, xdec_ref, sse_ref):
    # x_ref:   (N, H)   flattened rows, row r belongs to group m = r // T
    # h1_ref:  (M, H)   last timestep of each group (x[..., -1, :])
    # eps_ref: (N, L)   precomputed N(0,1) noise
    # temp_ref:(N, I)   reconstruction target
    # expand_ref: (N, M) 0/1 matrix, expand[r, m] = 1 iff row r is in group m
    # wml_ref: (H, 2*C*L) fused [mu_0..mu_{C-1}, lv_0..lv_{C-1}] weights
    # outputs: mulv (N, 2CL), prob (M, C), xdec (N, I), sse (1, 1)
    x = x_ref[...]
    N = x.shape[0]
    M = h1_ref.shape[0]
    CL = C * L

    # ---- fused mu/logvar linears (single lane-dense MXU pass) ----
    mulv = jnp.dot(x, wml_ref[...], preferred_element_type=jnp.float32) + bml_ref[...]
    mulv_ref[...] = mulv

    # ---- class head: relu -> linear -> /tau -> softmax ----
    h1 = jnp.maximum(h1_ref[...], 0.0)
    logits = (jnp.dot(h1, wc_ref[...], preferred_element_type=jnp.float32)
              + bc_ref[...]) * (1.0 / tau)
    mx = jnp.max(logits, axis=-1, keepdims=True)
    e = jnp.exp(logits - mx)
    denom = jnp.sum(e, axis=-1, keepdims=True)
    prob = e * pl.reciprocal(denom, approx=True)          # EUP, frees VALU
    prob_ref[...] = prob

    # ---- argmax (first occurrence) as a one-hot, per group ----
    col = jax.lax.broadcasted_iota(jnp.int32, (M, C), 1)
    is_max = prob == jnp.max(prob, axis=-1, keepdims=True)
    cls = jnp.min(jnp.where(is_max, col, C), axis=-1, keepdims=True)   # (M, 1)
    onehot_m = (col == cls).astype(jnp.float32)                        # (M, C)

    # expand per-group one-hot to per-row via a tiny matmul (no gather needed)
    onehot_rows = jnp.dot(expand_ref[...], onehot_m,
                          preferred_element_type=jnp.float32)          # (N, C)

    # ---- reparameterize: select the argmax component, z = mu + eps*std ----
    mu_sel = jnp.zeros((N, L), jnp.float32)
    lv_sel = jnp.zeros((N, L), jnp.float32)
    for c in range(C):                      # C is small & static -> unrolled
        w = onehot_rows[:, c:c + 1]                                    # (N, 1)
        mu_sel = mu_sel + w * mulv[:, c * L:(c + 1) * L]
        lv_sel = lv_sel + w * mulv[:, CL + c * L:CL + (c + 1) * L]
    z = mu_sel + eps_ref[...] * jnp.exp(0.5 * lv_sel)                  # (N, L)

    # ---- decode: fc3 -> relu -> fc4 ----
    h3 = jnp.maximum(
        jnp.dot(z, w3_ref[...], preferred_element_type=jnp.float32) + b3_ref[...],
        0.0)
    xd = jnp.dot(h3, w4_ref[...], preferred_element_type=jnp.float32) + b4_ref[...]
    xdec_ref[...] = xd

    # ---- reconstruction-loss reduction (sum of squared errors) ----
    d = xd - temp_ref[...]
    sse_ref[...] = jnp.sum(d * d, axis=1, keepdims=True).sum(axis=0, keepdims=True)


# ----------------------------------------------------------------------------
# Parameter init (deterministic, PyTorch nn.Linear default-style U(-k, k))
# ----------------------------------------------------------------------------
def _linear_init(key, fan_in, fan_out):
    kw, kb = jax.random.split(key)
    bound = 1.0 / (fan_in ** 0.5)
    w = jax.random.uniform(kw, (fan_in, fan_out), jnp.float32, -bound, bound)
    b = jax.random.uniform(kb, (1, fan_out), jnp.float32, -bound, bound)
    return w, b


def init_params(key, input_size, hidden_dim, latent_dim, num):
    ks = jax.random.split(key, 8 + 2 * num)
    p = {"input_size": input_size, "hidden_dim": hidden_dim,
         "latent_dim": latent_dim, "num": num}
    # fc1 is defined in the PyTorch __init__ but never used in forward().
    p["w1"], p["b1"] = _linear_init(ks[0], input_size, hidden_dim)
    p["wc"], p["bc"] = _linear_init(ks[1], hidden_dim, num)            # self.fc
    wmu, bmu, wlv, blv = [], [], [], []
    for c in range(num):
        w, b = _linear_init(ks[2 + c], hidden_dim, latent_dim)
        wmu.append(w); bmu.append(b[0])
        w, b = _linear_init(ks[2 + num + c], hidden_dim, latent_dim)
        wlv.append(w); blv.append(b[0])
    # Fuse per-component mu/logvar weights into one lane-dense matmul:
    # columns = [mu_0 .. mu_{C-1}, lv_0 .. lv_{C-1}], each block latent_dim wide.
    p["w_mulv"] = jnp.concatenate(wmu + wlv, axis=1)       # (H, 2*C*L)
    p["b_mulv"] = jnp.concatenate(bmu + blv, axis=0)[None, :]   # (1, 2*C*L)
    # self.mean (xavier_uniform) only feeds the dead `diff` expression in loss().
    lim = (6.0 / (num + latent_dim)) ** 0.5
    p["mean"] = jax.random.uniform(ks[2 + 2 * num], (num, latent_dim),
                                   jnp.float32, -lim, lim)
    p["w3"], p["b3"] = _linear_init(ks[3 + 2 * num], latent_dim, hidden_dim)
    p["w4"], p["b4"] = _linear_init(ks[4 + 2 * num], hidden_dim, input_size)
    return p


# ----------------------------------------------------------------------------
# Forward
# ----------------------------------------------------------------------------
def forward(params, x, temp, tau, eps_key):
    B1, B2, T, H = x.shape
    I = params["input_size"]; L = params["latent_dim"]; C = params["num"]
    N = B1 * B2 * T
    M = B1 * B2
    CL = C * L

    x_flat = x.reshape(N, H)
    h1 = x[:, :, -1, :].reshape(M, H)                     # x[..., -1, :]
    eps = jax.random.normal(eps_key, (N, L), jnp.float32)  # torch.randn_like
    temp_flat = jnp.broadcast_to(temp, (B1, B2, T, I)).reshape(N, I)
    # Row->group expansion matrix (row r belongs to group r // T); lets the
    # kernel replace the data-dependent gather with a tiny matmul.
    rows = jnp.arange(N, dtype=jnp.int32) // T
    expand = (rows[:, None] == jnp.arange(M, dtype=jnp.int32)[None, :]).astype(jnp.float32)

    flops = 2 * N * H * (2 * CL) + 2 * M * H * C + 2 * N * M * C \
        + 2 * N * L * H + 2 * N * H * I
    bytes_accessed = 4 * (N * H + M * H + N * L + N * I + N * M
                          + H * 2 * CL + 2 * CL + H * C + C
                          + L * H + H + H * I + I
                          + N * 2 * CL + M * C + N * I + 1)
    ce = pl.CostEstimate(flops=flops, transcendentals=M * C + N * L,
                         bytes_accessed=bytes_accessed)

    fused = pl.pallas_call(
        functools.partial(_vae_kernel, C, L, float(tau)),
        grid=(1,),
        in_specs=[
            _full_spec((N, H)), _full_spec((M, H)),
            _full_spec((N, L)), _full_spec((N, I)),
            _full_spec((N, M)),
            _full_spec((H, 2 * CL)), _full_spec((1, 2 * CL)),
            _full_spec((H, C)), _full_spec((1, C)),
            _full_spec((L, H)), _full_spec((1, H)),
            _full_spec((H, I)), _full_spec((1, I)),
        ],
        out_specs=(
            _full_spec((N, 2 * CL)), _full_spec((M, C)),
            _full_spec((N, I)), _full_spec((1, 1)),
        ),
        out_shape=(
            jax.ShapeDtypeStruct((N, 2 * CL), jnp.float32),
            jax.ShapeDtypeStruct((M, C), jnp.float32),
            jax.ShapeDtypeStruct((N, I), jnp.float32),
            jax.ShapeDtypeStruct((1, 1), jnp.float32),
        ),
        compiler_params=pltpu.CompilerParams(dimension_semantics=("arbitrary",)),
        cost_estimate=ce,
    )
    # TODO(synk): for large N (= B1*B2*T) tile the row axis with a "parallel"
    # grid (weights kept resident via constant index_map) instead of grid=(1,).
    mulv, prob_flat, xdec_flat, sse = fused(
        x_flat, h1, eps, temp_flat, expand,
        params["w_mulv"], params["b_mulv"], params["wc"], params["bc"],
        params["w3"], params["b3"], params["w4"], params["b4"])

    mu = mulv[:, :CL].reshape(B1, B2, T, C, L)
    logvar = mulv[:, CL:].reshape(B1, B2, T, C, L)
    class_prob = prob_flat.reshape(B1, B2, C)
    # Same first-occurrence argmax on the same prob values the kernel used for
    # its one-hot selection (torch.argmax returns int64; int32 here).
    class_res = jnp.argmax(class_prob, axis=-1).astype(jnp.int32)
    x_decode = xdec_flat.reshape(B1, B2, T, I)

    # loss(): mean((decode(z) - temp)**2) * input_size  (the `diff` term in the
    # PyTorch loss is computed then discarded, so it is skipped here)
    loss = sse[0, 0] / jnp.float32(N * I) * jnp.float32(I)

    # PyTorch forward calls self.decode(z) twice; decode is deterministic, so
    # both calls give the identical tensor -> reuse x_decode.
    return x_decode, mu, logvar, class_res, class_prob, loss


# ----------------------------------------------------------------------------
if __name__ == "__main__":
    key = jax.random.PRNGKey(0)
    k_param, k_x, k_temp, k_eps = jax.random.split(key, 4)

    input_size, hidden_dim, latent_dim, num = 16, 32, 8, 4
    B1, B2, T = 2, 2, 4

    params = init_params(k_param, input_size, hidden_dim, latent_dim, num)
    # x's feature dim is hidden_dim (fc2_mu / fc act directly on x in PyTorch)
    x = jax.random.normal(k_x, (B1, B2, T, hidden_dim), jnp.float32)
    temp = jax.random.normal(k_temp, (B1, B2, T, input_size), jnp.float32)

    outs = forward(params, x, temp, tau=1.0, eps_key=k_eps)
    outs = jax.block_until_ready(outs)
    x_decode, mu, logvar, class_res, class_prob, loss = outs

    assert x_decode.shape == (B1, B2, T, input_size)
    assert mu.shape == (B1, B2, T, num, latent_dim)
    assert logvar.shape == (B1, B2, T, num, latent_dim)
    assert class_res.shape == (B1, B2)
    assert class_prob.shape == (B1, B2, num)
    assert loss.shape == ()
    assert bool(jnp.all(jnp.isfinite(x_decode))) and bool(jnp.isfinite(loss))
    assert bool(jnp.all((class_res >= 0) & (class_res < num)))
    # approx reciprocal in the softmax denominator -> slightly looser tolerance
    assert bool(jnp.allclose(jnp.sum(class_prob, axis=-1), 1.0, atol=1e-2))

    print("KERNEL_OK")
</pallas_src>

<mosaic_0001>
module attributes {stable_mosaic.version = 11 : i64} {
  func.func @_vae_kernel(%arg0: i32, %arg1: memref<16x32xf32, #tpu.memory_space<vmem>>, %arg2: memref<4x32xf32, #tpu.memory_space<vmem>>, %arg3: memref<16x8xf32, #tpu.memory_space<vmem>>, %arg4: memref<16x16xf32, #tpu.memory_space<vmem>>, %arg5: memref<16x4xf32, #tpu.memory_space<vmem>>, %arg6: memref<32x64xf32, #tpu.memory_space<vmem>>, %arg7: memref<1x64xf32, #tpu.memory_space<vmem>>, %arg8: memref<32x4xf32, #tpu.memory_space<vmem>>, %arg9: memref<1x4xf32, #tpu.memory_space<vmem>>, %arg10: memref<8x32xf32, #tpu.memory_space<vmem>>, %arg11: memref<1x32xf32, #tpu.memory_space<vmem>>, %arg12: memref<32x16xf32, #tpu.memory_space<vmem>>, %arg13: memref<1x16xf32, #tpu.memory_space<vmem>>, %arg14: memref<16x64xf32, #tpu.memory_space<vmem>>, %arg15: memref<4x4xf32, #tpu.memory_space<vmem>>, %arg16: memref<16x16xf32, #tpu.memory_space<vmem>>, %arg17: memref<1x1xf32, #tpu.memory_space<vmem>>) attributes {dimension_semantics = [#tpu.dimension_semantics<arbitrary>], iteration_bounds = array<i64: 1>, scalar_prefetch = 0 : i64, scratch_operands = 0 : i64, tpu.core_type = #tpu.core_type<tc>, window_params = [{pipeline_mode = #tpu.pipeline_mode<synchronous>, transform_indices = @transform_0, window_bounds = array<i64: 16, 32>}, {pipeline_mode = #tpu.pipeline_mode<synchronous>, transform_indices = @transform_1, window_bounds = array<i64: 4, 32>}, {pipeline_mode = #tpu.pipeline_mode<synchronous>, transform_indices = @transform_2, window_bounds = array<i64: 16, 8>}, {pipeline_mode = #tpu.pipeline_mode<synchronous>, transform_indices = @transform_3, window_bounds = array<i64: 16, 16>}, {pipeline_mode = #tpu.pipeline_mode<synchronous>, transform_indices = @transform_4, window_bounds = array<i64: 16, 4>}, {pipeline_mode = #tpu.pipeline_mode<synchronous>, transform_indices = @transform_5, window_bounds = array<i64: 32, 64>}, {pipeline_mode = #tpu.pipeline_mode<synchronous>, transform_indices = @transform_6, window_bounds = array<i64: 1, 64>}, {pipeline_mode = #tpu.pipeline_mode<synchronous>, transform_indices = @transform_7, window_bounds = array<i64: 32, 4>}, {pipeline_mode = #tpu.pipeline_mode<synchronous>, transform_indices = @transform_8, window_bounds = array<i64: 1, 4>}, {pipeline_mode = #tpu.pipeline_mode<synchronous>, transform_indices = @transform_9, window_bounds = array<i64: 8, 32>}, {pipeline_mode = #tpu.pipeline_mode<synchronous>, transform_indices = @transform_10, window_bounds = array<i64: 1, 32>}, {pipeline_mode = #tpu.pipeline_mode<synchronous>, transform_indices = @transform_11, window_bounds = array<i64: 32, 16>}, {pipeline_mode = #tpu.pipeline_mode<synchronous>, transform_indices = @transform_12, window_bounds = array<i64: 1, 16>}, {pipeline_mode = #tpu.pipeline_mode<synchronous>, transform_indices = @transform_13, window_bounds = array<i64: 16, 64>}, {pipeline_mode = #tpu.pipeline_mode<synchronous>, transform_indices = @transform_14, window_bounds = array<i64: 4, 4>}, {pipeline_mode = #tpu.pipeline_mode<synchronous>, transform_indices = @transform_15, window_bounds = array<i64: 16, 16>}, {pipeline_mode = #tpu.pipeline_mode<synchronous>, transform_indices = @transform_16, window_bounds = array<i64: 1, 1>}]} {
    %c0 = arith.constant 0 : index
    %c0_0 = arith.constant 0 : index
    %0 = vector.load %arg1[%c0, %c0_0] : memref<16x32xf32, #tpu.memory_space<vmem>>, vector<16x32xf32>
    %c0_1 = arith.constant 0 : index
    %c0_2 = arith.constant 0 : index
    %1 = vector.load %arg6[%c0_1, %c0_2] : memref<32x64xf32, #tpu.memory_space<vmem>>, vector<32x64xf32>
    %cst = arith.constant dense<0.000000e+00> : vector<16x64xf32>
    %2 = tpu.matmul %0, %1, %cst {dimension_numbers = #tpu.dot_dimension_numbers<[1], [0], [0], [1], [0, 0, 1, 1], [], []>} : vector<16x32xf32>, vector<32x64xf32>, vector<16x64xf32> -> vector<16x64xf32>
    %c0_3 = arith.constant 0 : index
    %c0_4 = arith.constant 0 : index
    %3 = vector.load %arg7[%c0_3, %c0_4] : memref<1x64xf32, #tpu.memory_space<vmem>>, vector<1x64xf32>
    %4 = vector.broadcast %3 : vector<1x64xf32> to vector<16x64xf32>
    %5 = arith.addf %2, %4 : vector<16x64xf32>
    %c0_5 = arith.constant 0 : index
    %c0_6 = arith.constant 0 : index
    %6 = vector.load %arg14[%c0_5, %c0_6] : memref<16x64xf32, #tpu.memory_space<vmem>>, vector<16x64xf32>
    tpu.vector_store %arg14[%c0_5, %c0_6], %5 {strides = array<i32>} : memref<16x64xf32, #tpu.memory_space<vmem>>, vector<16x64xf32>,
    %c0_7 = arith.constant 0 : index
    %c0_8 = arith.constant 0 : index
    %7 = vector.load %arg2[%c0_7, %c0_8] : memref<4x32xf32, #tpu.memory_space<vmem>>, vector<4x32xf32>
    %cst_9 = arith.constant 0.000000e+00 : f32
    %8 = vector.broadcast %cst_9 : f32 to vector<4x32xf32>
    %9 = arith.maximumf %7, %8 : vector<4x32xf32>
    %c0_10 = arith.constant 0 : index
    %c0_11 = arith.constant 0 : index
    %10 = vector.load %arg8[%c0_10, %c0_11] : memref<32x4xf32, #tpu.memory_space<vmem>>, vector<32x4xf32>
    %cst_12 = arith.constant dense<0.000000e+00> : vector<4x4xf32>
    %11 = tpu.matmul %9, %10, %cst_12 {dimension_numbers = #tpu.dot_dimension_numbers<[1], [0], [0], [1], [0, 0, 1, 1], [], []>} : vector<4x32xf32>, vector<32x4xf32>, vector<4x4xf32> -> vector<4x4xf32>
    %c0_13 = arith.constant 0 : index
    %c0_14 = arith.constant 0 : index
    %12 = vector.load %arg9[%c0_13, %c0_14] : memref<1x4xf32, #tpu.memory_space<vmem>>, vector<1x4xf32>
    %13 = vector.broadcast %12 : vector<1x4xf32> to vector<4x4xf32>
    %14 = arith.addf %11, %13 : vector<4x4xf32>
    %cst_15 = arith.constant 1.000000e+00 : f32
    %15 = vector.broadcast %cst_15 : f32 to vector<4x4xf32>
    %16 = arith.mulf %14, %15 : vector<4x4xf32>
    %cst_16 = arith.constant dense<0xFF800000> : vector<4xf32>
    %17 = vector.multi_reduction <maximumf>, %16, %cst_16 [1] : vector<4x4xf32> to vector<4xf32>
    %18 = vector.shape_cast %17 : vector<4xf32> to vector<4x1xf32>
    %19 = vector.broadcast %18 : vector<4x1xf32> to vector<4x4xf32>
    %20 = arith.subf %16, %19 : vector<4x4xf32>
    %21 = math.exp %20 : vector<4x4xf32>
    %cst_17 = arith.constant dense<0.000000e+00> : vector<4xf32>
    %22 = vector.multi_reduction <add>, %21, %cst_17 [1] : vector<4x4xf32> to vector<4xf32>
    %23 = vector.shape_cast %22 : vector<4xf32> to vector<4x1xf32>
    %24 = tpu.reciprocal %23 {approx = true} : vector<4x1xf32> -> vector<4x1xf32>
    %25 = vector.broadcast %24 : vector<4x1xf32> to vector<4x4xf32>
    %26 = arith.mulf %21, %25 : vector<4x4xf32>
    %c0_18 = arith.constant 0 : index
    %c0_19 = arith.constant 0 : index
    %27 = vector.load %arg15[%c0_18, %c0_19] : memref<4x4xf32, #tpu.memory_space<vmem>>, vector<4x4xf32>
    tpu.vector_store %arg15[%c0_18, %c0_19], %26 {strides = array<i32>} : memref<4x4xf32, #tpu.memory_space<vmem>>, vector<4x4xf32>,
    %28 = tpu.iota {dimensions = array<i32: 1>} : vector<4x4xi32>
    %cst_20 = arith.constant dense<0xFF800000> : vector<4xf32>
    %29 = vector.multi_reduction <maximumf>, %26, %cst_20 [1] : vector<4x4xf32> to vector<4xf32>
    %30 = vector.shape_cast %29 : vector<4xf32> to vector<4x1xf32>
    %31 = vector.broadcast %30 : vector<4x1xf32> to vector<4x4xf32>
    %32 = arith.cmpf oeq, %26, %31 : vector<4x4xf32>
    %c4_i32 = arith.constant 4 : i32
    %33 = vector.broadcast %c4_i32 : i32 to vector<4x4xi32>
    %34 = arith.select %32, %28, %33 : vector<4x4xi1>, vector<4x4xi32>
    %cst_21 = arith.constant dense<2147483647> : vector<4xi32>
    %35 = vector.multi_reduction <minsi>, %34, %cst_21 [1] : vector<4x4xi32> to vector<4xi32>
    %36 = vector.shape_cast %35 : vector<4xi32> to vector<4x1xi32>
    %37 = vector.broadcast %36 : vector<4x1xi32> to vector<4x4xi32>
    %38 = arith.cmpi eq, %28, %37 : vector<4x4xi32>
    %39 = arith.extui %38 : vector<4x4xi1> to vector<4x4xi32>
    %40 = arith.sitofp %39 : vector<4x4xi32> to vector<4x4xf32>
    %c0_22 = arith.constant 0 : index
    %c0_23 = arith.constant 0 : index
    %41 = vector.load %arg5[%c0_22, %c0_23] : memref<16x4xf32, #tpu.memory_space<vmem>>, vector<16x4xf32>
    %cst_24 = arith.constant dense<0.000000e+00> : vector<16x4xf32>
    %42 = tpu.matmul %41, %40, %cst_24 {dimension_numbers = #tpu.dot_dimension_numbers<[1], [0], [0], [1], [0, 0, 1, 1], [], []>} : vector<16x4xf32>, vector<4x4xf32>, vector<16x4xf32> -> vector<16x4xf32>
    %cst_25 = arith.constant 0.000000e+00 : f32
    %43 = vector.broadcast %cst_25 : f32 to vector<16x8xf32>
    %cst_26 = arith.constant 0.000000e+00 : f32
    %44 = vector.broadcast %cst_26 : f32 to vector<16x8xf32>
    %45 = vector.extract_strided_slice %42 {offsets = [0, 0], sizes = [16, 1], strides = [1, 1]} : vector<16x4xf32> to vector<16x1xf32>
    %46 = vector.extract_strided_slice %5 {offsets = [0, 0], sizes = [16, 8], strides = [1, 1]} : vector<16x64xf32> to vector<16x8xf32>
    %47 = vector.broadcast %45 : vector<16x1xf32> to vector<16x8xf32>
    %48 = arith.mulf %47, %46 : vector<16x8xf32>
    %49 = arith.addf %43, %48 : vector<16x8xf32>
    %50 = vector.extract_strided_slice %5 {offsets = [0, 32], sizes = [16, 8], strides = [1, 1]} : vector<16x64xf32> to vector<16x8xf32>
    %51 = vector.broadcast %45 : vector<16x1xf32> to vector<16x8xf32>
    %52 = arith.mulf %51, %50 : vector<16x8xf32>
    %53 = arith.addf %44, %52 : vector<16x8xf32>
    %54 = vector.extract_strided_slice %42 {offsets = [0, 1], sizes = [16, 1], strides = [1, 1]} : vector<16x4xf32> to vector<16x1xf32>
    %55 = vector.extract_strided_slice %5 {offsets = [0, 8], sizes = [16, 8], strides = [1, 1]} : vector<16x64xf32> to vector<16x8xf32>
    %56 = vector.broadcast %54 : vector<16x1xf32> to vector<16x8xf32>
    %57 = arith.mulf %56, %55 : vector<16x8xf32>
    %58 = arith.addf %49, %57 : vector<16x8xf32>
    %59 = vector.extract_strided_slice %5 {offsets = [0, 40], sizes = [16, 8], strides = [1, 1]} : vector<16x64xf32> to vector<16x8xf32>
    %60 = vector.broadcast %54 : vector<16x1xf32> to vector<16x8xf32>
    %61 = arith.mulf %60, %59 : vector<16x8xf32>
    %62 = arith.addf %53, %61 : vector<16x8xf32>
    %63 = vector.extract_strided_slice %42 {offsets = [0, 2], sizes = [16, 1], strides = [1, 1]} : vector<16x4xf32> to vector<16x1xf32>
    %64 = vector.extract_strided_slice %5 {offsets = [0, 16], sizes = [16, 8], strides = [1, 1]} : vector<16x64xf32> to vector<16x8xf32>
    %65 = vector.broadcast %63 : vector<16x1xf32> to vector<16x8xf32>
    %66 = arith.mulf %65, %64 : vector<16x8xf32>
    %67 = arith.addf %58, %66 : vector<16x8xf32>
    %68 = vector.extract_strided_slice %5 {offsets = [0, 48], sizes = [16, 8], strides = [1, 1]} : vector<16x64xf32> to vector<16x8xf32>
    %69 = vector.broadcast %63 : vector<16x1xf32> to vector<16x8xf32>
    %70 = arith.mulf %69, %68 : vector<16x8xf32>
    %71 = arith.addf %62, %70 : vector<16x8xf32>
    %72 = vector.extract_strided_slice %42 {offsets = [0, 3], sizes = [16, 1], strides = [1, 1]} : vector<16x4xf32> to vector<16x1xf32>
    %73 = vector.extract_strided_slice %5 {offsets = [0, 24], sizes = [16, 8], strides = [1, 1]} : vector<16x64xf32> to vector<16x8xf32>
    %74 = vector.broadcast %72 : vector<16x1xf32> to vector<16x8xf32>
    %75 = arith.mulf %74, %73 : vector<16x8xf32>
    %76 = arith.addf %67, %75 : vector<16x8xf32>
    %77 = vector.extract_strided_slice %5 {offsets = [0, 56], sizes = [16, 8], strides = [1, 1]} : vector<16x64xf32> to vector<16x8xf32>
    %78 = vector.broadcast %72 : vector<16x1xf32> to vector<16x8xf32>
    %79 = arith.mulf %78, %77 : vector<16x8xf32>
    %80 = arith.addf %71, %79 : vector<16x8xf32>
    %c0_27 = arith.constant 0 : index
    %c0_28 = arith.constant 0 : index
    %81 = vector.load %arg3[%c0_27, %c0_28] : memref<16x8xf32, #tpu.memory_space<vmem>>, vector<16x8xf32>
    %cst_29 = arith.constant 5.000000e-01 : f32
    %82 = vector.broadcast %cst_29 : f32 to vector<16x8xf32>
    %83 = arith.mulf %82, %80 : vector<16x8xf32>
    %84 = math.exp %83 : vector<16x8xf32>
    %85 = arith.mulf %81, %84 : vector<16x8xf32>
    %86 = arith.addf %76, %85 : vector<16x8xf32>
    %c0_30 = arith.constant 0 : index
    %c0_31 = arith.constant 0 : index
    %87 = vector.load %arg10[%c0_30, %c0_31] : memref<8x32xf32, #tpu.memory_space<vmem>>, vector<8x32xf32>
    %cst_32 = arith.constant dense<0.000000e+00> : vector<16x32xf32>
    %88 = tpu.matmul %86, %87, %cst_32 {dimension_numbers = #tpu.dot_dimension_numbers<[1], [0], [0], [1], [0, 0, 1, 1], [], []>} : vector<16x8xf32>, vector<8x32xf32>, vector<16x32xf32> -> vector<16x32xf32>
    %c0_33 = arith.constant 0 : index
    %c0_34 = arith.constant 0 : index
    %89 = vector.load %arg11[%c0_33, %c0_34] : memref<1x32xf32, #tpu.memory_space<vmem>>, vector<1x32xf32>
    %90 = vector.broadcast %89 : vector<1x32xf32> to vector<16x32xf32>
    %91 = arith.addf %88, %90 : vector<16x32xf32>
    %cst_35 = arith.constant 0.000000e+00 : f32
    %92 = vector.broadcast %cst_35 : f32 to vector<16x32xf32>
    %93 = arith.maximumf %91, %92 : vector<16x32xf32>
    %c0_36 = arith.constant 0 : index
    %c0_37 = arith.constant 0 : index
    %94 = vector.load %arg12[%c0_36, %c0_37] : memref<32x16xf32, #tpu.memory_space<vmem>>, vector<32x16xf32>
    %cst_38 = arith.constant dense<0.000000e+00> : vector<16x16xf32>
    %95 = tpu.matmul %93, %94, %cst_38 {dimension_numbers = #tpu.dot_dimension_numbers<[1], [0], [0], [1], [0, 0, 1, 1], [], []>} : vector<16x32xf32>, vector<32x16xf32>, vector<16x16xf32> -> vector<16x16xf32>
    %c0_39 = arith.constant 0 : index
    %c0_40 = arith.constant 0 : index
    %96 = vector.load %arg13[%c0_39, %c0_40] : memref<1x16xf32, #tpu.memory_space<vmem>>, vector<1x16xf32>
    %97 = vector.broadcast %96 : vector<1x16xf32> to vector<16x16xf32>
    %98 = arith.addf %95, %97 : vector<16x16xf32>
    %c0_41 = arith.constant 0 : index
    %c0_42 = arith.constant 0 : index
    %99 = vector.load %arg16[%c0_41, %c0_42] : memref<16x16xf32, #tpu.memory_space<vmem>>, vector<16x16xf32>
    tpu.vector_store %arg16[%c0_41, %c0_42], %98 {strides = array<i32>} : memref<16x16xf32, #tpu.memory_space<vmem>>, vector<16x16xf32>,
    %c0_43 = arith.constant 0 : index
    %c0_44 = arith.constant 0 : index
    %100 = vector.load %arg4[%c0_43, %c0_44] : memref<16x16xf32, #tpu.memory_space<vmem>>, vector<16x16xf32>
    %101 = arith.subf %98, %100 : vector<16x16xf32>
    %102 = arith.mulf %101, %101 : vector<16x16xf32>
    %cst_45 = arith.constant dense<0.000000e+00> : vector<16xf32>
    %103 = vector.multi_reduction <add>, %102, %cst_45 [1] : vector<16x16xf32> to vector<16xf32>
    %104 = vector.shape_cast %103 : vector<16xf32> to vector<16x1xf32>
    %cst_46 = arith.constant dense<0.000000e+00> : vector<1xf32>
    %105 = vector.multi_reduction <add>, %104, %cst_46 [0] : vector<16x1xf32> to vector<1xf32>
    %106 = vector.shape_cast %105 : vector<1xf32> to vector<1x1xf32>
    %c0_47 = arith.constant 0 : index
    %c0_48 = arith.constant 0 : index
    %107 = vector.load %arg17[%c0_47, %c0_48] : memref<1x1xf32, #tpu.memory_space<vmem>>, vector<1x1xf32>
    tpu.vector_store %arg17[%c0_47, %c0_48], %106 {strides = array<i32>} : memref<1x1xf32, #tpu.memory_space<vmem>>, vector<1x1xf32>,
    return
  }
  func.func @transform_0(%arg0: i32) -> (i32, i32) {
    %c0_i32 = arith.constant 0 : i32
    %c0_i32_0 = arith.constant 0 : i32
    %c0_i32_1 = arith.constant 0 : i32
    return %c0_i32, %c0_i32_0 : i32, i32
  }
  func.func @transform_1(%arg0: i32) -> (i32, i32) {
    %c0_i32 = arith.constant 0 : i32
    %c0_i32_0 = arith.constant 0 : i32
    %c0_i32_1 = arith.constant 0 : i32
    return %c0_i32, %c0_i32_0 : i32, i32
  }
  func.func @transform_2(%arg0: i32) -> (i32, i32) {
    %c0_i32 = arith.constant 0 : i32
    %c0_i32_0 = arith.constant 0 : i32
    %c0_i32_1 = arith.constant 0 : i32
    return %c0_i32, %c0_i32_0 : i32, i32
  }
  func.func @transform_3(%arg0: i32) -> (i32, i32) {
    %c0_i32 = arith.constant 0 : i32
    %c0_i32_0 = arith.constant 0 : i32
    %c0_i32_1 = arith.constant 0 : i32
    return %c0_i32, %c0_i32_0 : i32, i32
  }
  func.func @transform_4(%arg0: i32) -> (i32, i32) {
    %c0_i32 = arith.constant 0 : i32
    %c0_i32_0 = arith.constant 0 : i32
    %c0_i32_1 = arith.constant 0 : i32
    return %c0_i32, %c0_i32_0 : i32, i32
  }
  func.func @transform_5(%arg0: i32) -> (i32, i32) {
    %c0_i32 = arith.constant 0 : i32
    %c0_i32_0 = arith.constant 0 : i32
    %c0_i32_1 = arith.constant 0 : i32
    return %c0_i32, %c0_i32_0 : i32, i32
  }
  func.func @transform_6(%arg0: i32) -> (i32, i32) {
    %c0_i32 = arith.constant 0 : i32
    %c0_i32_0 = arith.constant 0 : i32
    %c0_i32_1 = arith.constant 0 : i32
    return %c0_i32, %c0_i32_0 : i32, i32
  }
  func.func @transform_7(%arg0: i32) -> (i32, i32) {
    %c0_i32 = arith.constant 0 : i32
    %c0_i32_0 = arith.constant 0 : i32
    %c0_i32_1 = arith.constant 0 : i32
    return %c0_i32, %c0_i32_0 : i32, i32
  }
  func.func @transform_8(%arg0: i32) -> (i32, i32) {
    %c0_i32 = arith.constant 0 : i32
    %c0_i32_0 = arith.constant 0 : i32
    %c0_i32_1 = arith.constant 0 : i32
    return %c0_i32, %c0_i32_0 : i32, i32
  }
  func.func @transform_9(%arg0: i32) -> (i32, i32) {
    %c0_i32 = arith.constant 0 : i32
    %c0_i32_0 = arith.constant 0 : i32
    %c0_i32_1 = arith.constant 0 : i32
    return %c0_i32, %c0_i32_0 : i32, i32
  }
  func.func @transform_10(%arg0: i32) -> (i32, i32) {
    %c0_i32 = arith.constant 0 : i32
    %c0_i32_0 = arith.constant 0 : i32
    %c0_i32_1 = arith.constant 0 : i32
    return %c0_i32, %c0_i32_0 : i32, i32
  }
  func.func @transform_11(%arg0: i32) -> (i32, i32) {
    %c0_i32 = arith.constant 0 : i32
    %c0_i32_0 = arith.constant 0 : i32
    %c0_i32_1 = arith.constant 0 : i32
    return %c0_i32, %c0_i32_0 : i32, i32
  }
  func.func @transform_12(%arg0: i32) -> (i32, i32) {
    %c0_i32 = arith.constant 0 : i32
    %c0_i32_0 = arith.constant 0 : i32
    %c0_i32_1 = arith.constant 0 : i32
    return %c0_i32, %c0_i32_0 : i32, i32
  }
  func.func @transform_13(%arg0: i32) -> (i32, i32) {
    %c0_i32 = arith.constant 0 : i32
    %c0_i32_0 = arith.constant 0 : i32
    %c0_i32_1 = arith.constant 0 : i32
    return %c0_i32, %c0_i32_0 : i32, i32
  }
  func.func @transform_14(%arg0: i32) -> (i32, i32) {
    %c0_i32 = arith.constant 0 : i32
    %c0_i32_0 = arith.constant 0 : i32
    %c0_i32_1 = arith.constant 0 : i32
    return %c0_i32, %c0_i32_0 : i32, i32
  }
  func.func @transform_15(%arg0: i32) -> (i32, i32) {
    %c0_i32 = arith.constant 0 : i32
    %c0_i32_0 = arith.constant 0 : i32
    %c0_i32_1 = arith.constant 0 : i32
    return %c0_i32, %c0_i32_0 : i32, i32
  }
  func.func @transform_16(%arg0: i32) -> (i32, i32) {
    %c0_i32 = arith.constant 0 : i32
    %c0_i32_0 = arith.constant 0 : i32
    %c0_i32_1 = arith.constant 0 : i32
    return %c0_i32, %c0_i32_0 : i32, i32
  }
}

</mosaic_0001>

<llo_original>
// kernel: tpu_custom_call.1
$region0: #{tpu_custom_call.1}
  #allocation0 [shape = 'u32[]', space=smem, size = 0x4, offset = 0x4, fixed_abs, tag = 'smem constant byte address 0x4 - core index']
  #allocation1 [shape = 'u32[72,128]{1,0:T(1,128)}', space=vmem, size = 0x9000, scoped, tag = 'internal scratch']
  %s0 = inlined_call_operand.vmem [shape: f32[16,32], index: 0, kind: input, shape index: {}]
  %s1 = inlined_call_operand.vmem [shape: f32[4,32], index: 1, kind: input, shape index: {}]
  %s2 = inlined_call_operand.vmem [shape: f32[16,8], index: 2, kind: input, shape index: {}]
  %s3 = inlined_call_operand.vmem [shape: f32[16,16], index: 3, kind: input, shape index: {}]
  %s4 = inlined_call_operand.vmem [shape: f32[16,4], index: 4, kind: input, shape index: {}]
  %s5 = inlined_call_operand.vmem [shape: f32[32,64], index: 5, kind: input, shape index: {}]
  %s6 = inlined_call_operand.vmem [shape: f32[1,64], index: 6, kind: input, shape index: {}]
  %s7 = inlined_call_operand.vmem [shape: f32[32,4], index: 7, kind: input, shape index: {}]
  %s8 = inlined_call_operand.vmem [shape: f32[1,4], index: 8, kind: input, shape index: {}]
  %s9 = inlined_call_operand.vmem [shape: f32[8,32], index: 9, kind: input, shape index: {}]
  %s10 = inlined_call_operand.vmem [shape: f32[1,32], index: 10, kind: input, shape index: {}]
  %s11 = inlined_call_operand.vmem [shape: f32[32,16], index: 11, kind: input, shape index: {}]
  %s12 = inlined_call_operand.vmem [shape: f32[1,16], index: 12, kind: input, shape index: {}]
  %s13 = inlined_call_operand.hbm [shape: f32[16,64], index: 13, kind: output, shape index: {0}]
  %s14 = inlined_call_operand.hbm [shape: f32[4,4], index: 14, kind: output, shape index: {1}]
  %s15 = inlined_call_operand.hbm [shape: f32[16,16], index: 15, kind: output, shape index: {2}]
  %s16 = inlined_call_operand.hbm [shape: f32[1,1], index: 16, kind: output, shape index: {3}]
  %17 = xla_tuple %s13, %s14, %s15, %s16
  %s18 = sld [smem:[#allocation0]]
  $region86: #{tpu_custom_call.1} parent=0
    _
  %s20 = ssub.s32 1, %s18
  %s21 = scalar_select 0, %s20, %s18
  $region1: #{tpu_custom_call.1} parent=0
    #allocation2 [shape = 'u8[8192]{0}', space=vmem, size = 0x2000, scoped, tag = 'output window, operand 0, single buffered']
    #allocation3 [shape = 's32[1]{0}', space=sflag, size = 0x4, scoped, tag = 'scoped memory for tpu_custom_call.1']
    #allocation4 [shape = 'u8[2048]{0}', space=vmem, size = 0x800, scoped, tag = 'output window, operand 1, single buffered']
    #allocation5 [shape = 's32[1]{0}', space=sflag, size = 0x4, scoped, tag = 'scoped memory for tpu_custom_call.1']
    #allocation6 [shape = 'u8[8192]{0}', space=vmem, size = 0x2000, scoped, tag = 'output window, operand 2, single buffered']
    #allocation7 [shape = 'u8[512]{0}', space=vmem, size = 0x400, scoped, tag = 'output window, operand 3, single buffered']
    #allocation8 [shape = 's32[1]{0}', space=sflag, size = 0x4, scoped, tag = 'scoped memory for tpu_custom_call.1']
    %22 = vsyncpa [#allocation3], 0
    %23 = vsyncpa [#allocation5], 0
    %24 = vsyncpa [#allocation8], 0
    // Predicated region
    $region2: #{tpu_custom_call.1} parent=1 // pred_check
      _
    $region3: #{tpu_custom_call.1} parent=1 // pred_check_branch
      %26 = sbr.rel (0) target = $region5
    $region4: #{tpu_custom_call.1} parent=1 // pred_region
      _
    $region5: #{tpu_custom_call.1} parent=1 // pred_fallthru
      _
    // Predicated region
    $region6: #{tpu_custom_call.1} parent=1 // pred_check
      _
    $region7: #{tpu_custom_call.1} parent=1 // pred_check_branch
      %28 = sbr.rel (0) target = $region9
    $region8: #{tpu_custom_call.1} parent=1 // pred_region
      _
    $region9: #{tpu_custom_call.1} parent=1 // pred_fallthru
      _
    // Predicated region
    $region10: #{tpu_custom_call.1} parent=1 // pred_check
      _
    $region11: #{tpu_custom_call.1} parent=1 // pred_check_branch
      %30 = sbr.rel (0) target = $region13
    $region12: #{tpu_custom_call.1} parent=1 // pred_region
      _
    $region13: #{tpu_custom_call.1} parent=1 // pred_fallthru
      _
    // Predicated region
    $region14: #{tpu_custom_call.1} parent=1 // pred_check
      _
    $region15: #{tpu_custom_call.1} parent=1 // pred_check_branch
      %32 = sbr.rel (0) target = $region17
    $region16: #{tpu_custom_call.1} parent=1 // pred_region
      _
    $region17: #{tpu_custom_call.1} parent=1 // pred_fallthru
      _
    // Predicated region
    $region18: #{tpu_custom_call.1} parent=1 // pred_check
      _
    $region19: #{tpu_custom_call.1} parent=1 // pred_check_branch
      %34 = sbr.rel (0) target = $region21
    $region20: #{tpu_custom_call.1} parent=1 // pred_region
      _
    $region21: #{tpu_custom_call.1} parent=1 // pred_fallthru
      _
    // Predicated region
    $region22: #{tpu_custom_call.1} parent=1 // pred_check
      _
    $region23: #{tpu_custom_call.1} parent=1 // pred_check_branch
      %36 = sbr.rel (0) target = $region25
    $region24: #{tpu_custom_call.1} parent=1 // pred_region
      _
    $region25: #{tpu_custom_call.1} parent=1 // pred_fallthru
      _
    // Predicated region
    $region26: #{tpu_custom_call.1} parent=1 // pred_check
      _
    $region27: #{tpu_custom_call.1} parent=1 // pred_check_branch
      %38 = sbr.rel (0) target = $region29
    $region28: #{tpu_custom_call.1} parent=1 // pred_region
      _
    $region29: #{tpu_custom_call.1} parent=1 // pred_fallthru
      _
    // Predicated region
    $region30: #{tpu_custom_call.1} parent=1 // pred_check
      _
    $region31: #{tpu_custom_call.1} parent=1 // pred_check_branch
      %40 = sbr.rel (0) target = $region33
    $region32: #{tpu_custom_call.1} parent=1 // pred_region
      _
    $region33: #{tpu_custom_call.1} parent=1 // pred_fallthru
      _
    // Predicated region
    $region34: #{tpu_custom_call.1} parent=1 // pred_check
      _
    $region35: #{tpu_custom_call.1} parent=1 // pred_check_branch
      %42 = sbr.rel (0) target = $region37
    $region36: #{tpu_custom_call.1} parent=1 // pred_region
      _
    $region37: #{tpu_custom_call.1} parent=1 // pred_fallthru
      _
    // Predicated region
    $region38: #{tpu_custom_call.1} parent=1 // pred_check
      _
    $region39: #{tpu_custom_call.1} parent=1 // pred_check_branch
      %44 = sbr.rel (0) target = $region41
    $region40: #{tpu_custom_call.1} parent=1 // pred_region
      _
    $region41: #{tpu_custom_call.1} parent=1 // pred_fallthru
      _
    // Predicated region
    $region42: #{tpu_custom_call.1} parent=1 // pred_check
      _
    $region43: #{tpu_custom_call.1} parent=1 // pred_check_branch
      %46 = sbr.rel (0) target = $region45
    $region44: #{tpu_custom_call.1} parent=1 // pred_region
      _
    $region45: #{tpu_custom_call.1} parent=1 // pred_fallthru
      _
    // Predicated region
    $region46: #{tpu_custom_call.1} parent=1 // pred_check
      _
    $region47: #{tpu_custom_call.1} parent=1 // pred_check_branch
      %48 = sbr.rel (0) target = $region49
    $region48: #{tpu_custom_call.1} parent=1 // pred_region
      _
    $region49: #{tpu_custom_call.1} parent=1 // pred_fallthru
      _
    // Predicated region
    $region50: #{tpu_custom_call.1} parent=1 // pred_check
      _
    $region51: #{tpu_custom_call.1} parent=1 // pred_check_branch
      %50 = sbr.rel (0) target = $region53
    $region52: #{tpu_custom_call.1} parent=1 // pred_region
      _
    $region53: #{tpu_custom_call.1} parent=1 // pred_fallthru
      _
    %v51 = vld [vmem:[%s0] sm:$0xff]
    %v52 = vld [vmem:[%s0 + $0x8] sm:$0xff]
    %v53 = vld [vmem:[%s5] sm:$0xff]
    %v54 = vld [vmem:[%s5 + $0x8] sm:$0xff]
    %v55 = vld [vmem:[%s5 + $0x10] sm:$0xff]
    %v56 = vld [vmem:[%s5 + $0x18] sm:$0xff]
    %v57 = vld [vmem:[%s6] sm:$0x1]
    %v59 = vperm.slane %v57, 0
    %vm61 = vcmask 261120
    %v63 = vsel %vm61, %v51, 0
    %v66 = vsel %vm61, %v52, 0
    %68 = vmatpush.msra.mxu0 0.0
    %69 = vmatpush.msra.mxu0 0.0
    %70 = vmatpush.msra.mxu0 0.0
    %71 = vmatpush.msra.mxu0 0.0
    %72 = vmatpush.msra.mxu0 0.0
    %73 = vmatpush.msra.mxu0 0.0
    %74 = vmatpush.msra.mxu0 0.0
    %75 = vmatpush.msra.mxu0 0.0
    %76 = vmatpush.msra.mxu0 0.0
    %77 = vmatpush.msra.mxu0 0.0
    %78 = vmatpush.msra.mxu0 0.0
    %79 = vmatpush.msra.mxu0 0.0
    %80 = vmatpush.msra.mxu0 %v56
    %81 = vmatpush.msra.mxu0 %v55
    %82 = vmatpush.msra.mxu0 %v54
    %83 = vmatpush.msra.mxu0 %v53
    %84 = vmatmul.f32.gmra.mxu0 %v63
    %v85 = vpop.f32.mrf.mxu0
    %v86 = vadd.f32 %v59, %v85
    %87 = vmatmul.f32.gmra.mxu0 %v66
    %v88 = vpop.f32.mrf.mxu0
    %v89 = vadd.f32 %v59, %v88
    %90 = vdwg.mxu0
    %vm91 = vcmask 523264
    %92 = vst.msk [vmem:[#allocation2] sm:$0xff] %vm91, %v86
    %93 = vst.msk [vmem:[#allocation2 + $0x8] sm:$0xff] %vm91, %v89
    %v94 = vld [vmem:[%s1] sm:$0xf]
    %v95 = vmax.f32 %v94, 0.0
    %v96 = vld [vmem:[%s7] sm:$0xff]
    %v97 = vld [vmem:[%s7 + $0x8] sm:$0xff]
    %v98 = vld [vmem:[%s7 + $0x10] sm:$0xff]
    %v99 = vld [vmem:[%s7 + $0x18] sm:$0xff]
    %v100 = vld [vmem:[%s8] sm:$0x1]
    %v102 = vperm.slane %v100, 0
    %v105 = vsel %vm61, %v95, 0
    %107 = vmatpush.msra.mxu0 0.0
    %108 = vmatpush.msra.mxu0 0.0
    %109 = vmatpush.msra.mxu0 0.0
    %110 = vmatpush.msra.mxu0 0.0
    %111 = vmatpush.msra.mxu0 0.0
    %112 = vmatpush.msra.mxu0 0.0
    %113 = vmatpush.msra.mxu0 0.0
    %114 = vmatpush.msra.mxu0 0.0
    %115 = vmatpush.msra.mxu0 0.0
    %116 = vmatpush.msra.mxu0 0.0
    %117 = vmatpush.msra.mxu0 0.0
    %118 = vmatpush.msra.mxu0 0.0
    %119 = vmatpush.msra.mxu0 %v99
    %120 = vmatpush.msra.mxu0 %v98
    %121 = vmatpush.msra.mxu0 %v97
    %122 = vmatpush.msra.mxu0 %v96
    %123 = vmatmul.f32.gmra.mxu0 %v105
    %v124 = vpop.f32.mrf.mxu0
    %v125 = vadd.f32 %v102, %v124
    %126 = vdwg.mxu0
    %vm127 = vcmask 27648
    %v128 = vsel %vm127, %v125, -inf
    %129 = vmax.xlane.f32.xlu0 %v128
    %v130 = vpop.xlane.xlu0 %129
    %v131 = vsub.f32 %v125, %v130
    %v132 = vmul.f32 %v131, 1.442695
    %v133 = vpow.pop %v132
    %v134 = vsel %vm127, %v133, 0.0
    %135 = vadd.xlane.f32.xlu0 %v134
    %v136 = vpop.xlane.xlu0 %135
    %v137 = vrcp.pop %v136
    %v138 = vmul.f32 %v133, %v137
    %139 = vst.msk [vmem:[#allocation4] sm:$0xf] %vm127, %v138
    %v140 = vlaneseq
    %v141 = vand.u32 %v140, 127
    %v142 = vsel %vm127, %v138, -inf
    %143 = vmax.xlane.f32.xlu0 %v142
    %v144 = vpop.xlane.xlu0 %143
    %vm145 = vcmp.eq.f32.partialorder %v138, %v144
    %v146 = vsel %vm145, %v141, 4
    %v147 = vsel %vm127, %v146, 2147483647
    %v148 = vand.u32 %v147, 65535
    %v149 = vshra.s32 %v147, 16
    %v150 = vcvt.s32.f32 %v148
    %v151 = vcvt.s32.f32 %v149
    %152 = vmin.xlane.f32.xlu0 %v151
    %v153 = vpop.xlane.xlu0 %152
    %vm154 = vcmp.eq.f32.partialorder %v151, %v153
    %v155 = vsel %vm154, %v150, inf
    %156 = vmin.xlane.f32.xlu0 %v155
    %v157 = vpop.xlane.xlu0 %156
    %v158 = vcvt.f32.s32 %v157
    %v159 = vcvt.f32.s32 %v153
    %v160 = vshll.u32 %v159, 16
    %v161 = vadd.s32 %v160, %v158
    %vm162 = vcmp.eq.s32.totalorder %v141, %v161
    %v163 = vsel %vm162, 1, 0
    %v164 = vcvt.s32.f32 %v163
    %v165 = vld [vmem:[%s4] sm:$0xff]
    %v166 = vld [vmem:[%s4 + $0x8] sm:$0xff]
    %vm167 = vcmask 31744
    %v169 = vsel %vm167, %v165, 0
    %v172 = vsel %vm167, %v166, 0
    %vm174 = vcmask 1043456
    %v176 = vsel %vm174, %v164, 0
    %178 = vmatpush.msra.mxu0 0.0
    %179 = vmatpush.msra.mxu0 0.0
    %180 = vmatpush.msra.mxu0 0.0
    %181 = vmatpush.msra.mxu0 0.0
    %182 = vmatpush.msra.mxu0 0.0
    %183 = vmatpush.msra.mxu0 0.0
    %184 = vmatpush.msra.mxu0 0.0
    %185 = vmatpush.msra.mxu0 0.0
    %186 = vmatpush.msra.mxu0 0.0
    %187 = vmatpush.msra.mxu0 0.0
    %188 = vmatpush.msra.mxu0 0.0
    %189 = vmatpush.msra.mxu0 0.0
    %190 = vmatpush.msra.mxu0 0.0
    %191 = vmatpush.msra.mxu0 0.0
    %192 = vmatpush.msra.mxu0 0.0
    %193 = vmatpush.msra.mxu0 %v176
    %194 = vmatmul.f32.gmra.mxu0 %v169
    %v195 = vpop.f32.mrf.mxu0
    %v196 = vadd.f32 0.0, %v195
    %197 = vmatmul.f32.gmra.mxu0 %v172
    %v198 = vpop.f32.mrf.mxu0
    %v199 = vadd.f32 0.0, %v198
    %200 = vdwg.mxu0
    %202 = vset.pattern.permute.xlu0 0
    %203 = vperm.xlu0 %202, %v196
    %v204 = vpop.permute.xlu0 %203
    %207 = vset.pattern.permute.xlu0 0
    %208 = vperm.xlu0 %207, %v199
    %v209 = vpop.permute.xlu0 %208
    %v211 = vmul.f32 %v204, %v86
    %v212 = vmul.f32 %v209, %v89
    %v213 = vadd.f32 %v211, 0.0
    %v214 = vadd.f32 %v212, 0.0
    %215 = vset.pattern.permute.xlu0 1
    %216 = vperm.xlu0 %215, %v196
    %v217 = vpop.permute.xlu0 %216
    %219 = vset.pattern.permute.xlu0 1
    %220 = vperm.xlu0 %219, %v199
    %v221 = vpop.permute.xlu0 %220
    %v223 = vmul.f32 %v217, %v86
    %v224 = vmul.f32 %v221, %v89
    %227 = vrot.lane.b32.xlu0 %v223, 120
    %v228 = vpop.permute.xlu0 %227
    %229 = vrot.lane.b32.xlu0 %v224, 120
    %v230 = vpop.permute.xlu0 %229
    %v233 = vadd.f32 %v213, %v228
    %v234 = vadd.f32 %v214, %v230
    %235 = vset.pattern.permute.xlu0 2
    %236 = vperm.xlu0 %235, %v196
    %v237 = vpop.permute.xlu0 %236
    %239 = vset.pattern.permute.xlu0 2
    %240 = vperm.xlu0 %239, %v199
    %v241 = vpop.permute.xlu0 %240
    %v243 = vmul.f32 %v237, %v86
    %v244 = vmul.f32 %v241, %v89
    %247 = vrot.lane.b32.xlu0 %v243, 112
    %v248 = vpop.permute.xlu0 %247
    %249 = vrot.lane.b32.xlu0 %v244, 112
    %v250 = vpop.permute.xlu0 %249
    %v253 = vadd.f32 %v233, %v248
    %v254 = vadd.f32 %v234, %v250
    %255 = vset.pattern.permute.xlu0 3
    %256 = vperm.xlu0 %255, %v196
    %v257 = vpop.permute.xlu0 %256
    %259 = vset.pattern.permute.xlu0 3
    %260 = vperm.xlu0 %259, %v199
    %v261 = vpop.permute.xlu0 %260
    %v263 = vmul.f32 %v257, %v86
    %v264 = vmul.f32 %v261, %v89
    %267 = vrot.lane.b32.xlu0 %v263, 104
    %v268 = vpop.permute.xlu0 %267
    %269 = vrot.lane.b32.xlu0 %v264, 104
    %v270 = vpop.permute.xlu0 %269
    %v273 = vadd.f32 %v253, %v268
    %v274 = vadd.f32 %v254, %v270
    %v275 = vld [vmem:[%s2] sm:$0xff]
    %v276 = vld [vmem:[%s2 + $0x8] sm:$0xff]
    %v277 = vmul.f32 %v273, 0.5
    %v278 = vmul.f32 %v274, 0.5
    %v279 = vmul.f32 %v277, 1.442695
    %v280 = vpow.pop %v279
    %v281 = vmul.f32 %v278, 1.442695
    %v282 = vpow.pop %v281
    %285 = vrot.lane.b32.xlu0 %v280, 96
    %v286 = vpop.permute.xlu0 %285
    %287 = vrot.lane.b32.xlu0 %v282, 96
    %v288 = vpop.permute.xlu0 %287
    %v291 = vmul.f32 %v275, %v286
    %v292 = vmul.f32 %v276, %v288
    %v293 = vadd.f32 %v273, %v291
    %v294 = vadd.f32 %v274, %v292
    %v295 = vld [vmem:[%s9] sm:$0xff]
    %v296 = vld [vmem:[%s10] sm:$0x1]
    %v298 = vperm.slane %v296, 0
    %vm300 = vcmask 64512
    %v302 = vsel %vm300, %v293, 0
    %v305 = vsel %vm300, %v294, 0
    %307 = vmatpush.msra.mxu0 0.0
    %308 = vmatpush.msra.mxu0 0.0
    %309 = vmatpush.msra.mxu0 0.0
    %310 = vmatpush.msra.mxu0 0.0
    %311 = vmatpush.msra.mxu0 0.0
    %312 = vmatpush.msra.mxu0 0.0
    %313 = vmatpush.msra.mxu0 0.0
    %314 = vmatpush.msra.mxu0 0.0
    %315 = vmatpush.msra.mxu0 0.0
    %316 = vmatpush.msra.mxu0 0.0
    %317 = vmatpush.msra.mxu0 0.0
    %318 = vmatpush.msra.mxu0 0.0
    %319 = vmatpush.msra.mxu0 0.0
    %320 = vmatpush.msra.mxu0 0.0
    %321 = vmatpush.msra.mxu0 0.0
    %322 = vmatpush.msra.mxu0 %v295
    %323 = vmatmul.f32.gmra.mxu0 %v302
    %v324 = vpop.f32.mrf.mxu0
    %v325 = vadd.f32 %v298, %v324
    %326 = vmatmul.f32.gmra.mxu0 %v305
    %v327 = vpop.f32.mrf.mxu0
    %v328 = vadd.f32 %v298, %v327
    %329 = vdwg.mxu0
    %v330 = vmax.f32 %v325, 0.0
    %v331 = vmax.f32 %v328, 0.0
    %v332 = vld [vmem:[%s11] sm:$0xff]
    %v333 = vld [vmem:[%s11 + $0x8] sm:$0xff]
    %v334 = vld [vmem:[%s11 + $0x10] sm:$0xff]
    %v335 = vld [vmem:[%s11 + $0x18] sm:$0xff]
    %v336 = vld [vmem:[%s12] sm:$0x1]
    %v338 = vperm.slane %v336, 0
    %v341 = vsel %vm61, %v330, 0
    %v344 = vsel %vm61, %v331, 0
    %346 = vmatpush.msra.mxu0 0.0
    %347 = vmatpush.msra.mxu0 0.0
    %348 = vmatpush.msra.mxu0 0.0
    %349 = vmatpush.msra.mxu0 0.0
    %350 = vmatpush.msra.mxu0 0.0
    %351 = vmatpush.msra.mxu0 0.0
    %352 = vmatpush.msra.mxu0 0.0
    %353 = vmatpush.msra.mxu0 0.0
    %354 = vmatpush.msra.mxu0 0.0
    %355 = vmatpush.msra.mxu0 0.0
    %356 = vmatpush.msra.mxu0 0.0
    %357 = vmatpush.msra.mxu0 0.0
    %358 = vmatpush.msra.mxu0 %v335
    %359 = vmatpush.msra.mxu0 %v334
    %360 = vmatpush.msra.mxu0 %v333
    %361 = vmatpush.msra.mxu0 %v332
    %362 = vmatmul.f32.gmra.mxu0 %v341
    %v363 = vpop.f32.mrf.mxu0
    %v364 = vadd.f32 %v338, %v363
    %365 = vmatmul.f32.gmra.mxu0 %v344
    %v366 = vpop.f32.mrf.mxu0
    %v367 = vadd.f32 %v338, %v366
    %368 = vdwg.mxu0
    %vm369 = vcmask 130048
    %370 = vst.msk [vmem:[#allocation6] sm:$0xff] %vm369, %v364
    %371 = vst.msk [vmem:[#allocation6 + $0x8] sm:$0xff] %vm369, %v367
    %v372 = vld [vmem:[%s3] sm:$0xff]
    %v373 = vld [vmem:[%s3 + $0x8] sm:$0xff]
    %v374 = vsub.f32 %v364, %v372
    %v375 = vsub.f32 %v367, %v373
    %v376 = vmul.f32 %v374, %v374
    %v377 = vmul.f32 %v375, %v375
    %v378 = vsel %vm369, %v376, 0.0
    %379 = vadd.xlane.f32.xlu0 %v378
    %v380 = vpop.xlane.xlu0 %379
    %v381 = vsel %vm369, %v377, 0.0
    %382 = vadd.xlane.f32.xlu0 %v381
    %v383 = vpop.xlane.xlu0 %382
    %v384 = vadd.f32 %v380, %v383
    %v385 = vrot.slane %v384, 4
    %v386 = vadd.f32 %v384, %v385
    %v387 = vrot.slane %v386, 2
    %v388 = vadd.f32 %v386, %v387
    %v389 = vrot.slane %v388, 1
    %v390 = vadd.f32 %v388, %v389
    %vm391 = vcmask 0
    %392 = vst.msk [vmem:[#allocation7] sm:$0x1] %vm391, %v390
    // Predicated region
    $region54: #{tpu_custom_call.1} parent=1 // pred_check
      _
    $region55: #{tpu_custom_call.1} parent=1 // pred_check_branch
      %394 = sbr.rel (0) target = $region57
    $region56: #{tpu_custom_call.1} parent=1 // pred_region
      %396 = vsyncadd [#allocation3], 0
      %s397 = sshll.u32 [#allocation2], 4
      %s398 = int_to_ptr.vmem [resolvable:$true] %s397
      %s399 = sshll.u32 %s13, 4
      %s400 = int_to_ptr.hbm [resolvable:$true] %s399
      %405 = dma.vmem_to_hbm [thread:$0]  %s398, 256, %s400, [#allocation3], 128, 128, 8
    $region57: #{tpu_custom_call.1} parent=1 // pred_fallthru
      _
    // Predicated region
    $region58: #{tpu_custom_call.1} parent=1 // pred_check
      _
    $region59: #{tpu_custom_call.1} parent=1 // pred_check_branch
      %407 = sbr.rel (0) target = $region61
    $region60: #{tpu_custom_call.1} parent=1 // pred_region
      %409 = vsyncadd [#allocation5], 0
      %s411 = sshll.u32 [#allocation4], 4
      %s412 = int_to_ptr.vmem [resolvable:$true] %s411
      %s413 = sshll.u32 %s14, 4
      %s414 = int_to_ptr.hbm [resolvable:$true] %s413
      %416 = dma.vmem_to_hbm [thread:$0]  %s412, 64, %s414, [#allocation5]
    $region61: #{tpu_custom_call.1} parent=1 // pred_fallthru
      _
    // Predicated region
    $region62: #{tpu_custom_call.1} parent=1 // pred_check
      _
    $region63: #{tpu_custom_call.1} parent=1 // pred_check_branch
      %418 = sbr.rel (0) target = $region65
    $region64: #{tpu_custom_call.1} parent=1 // pred_region
      %420 = vsyncadd [#allocation5], 0
      %s421 = sshll.u32 [#allocation6], 4
      %s422 = int_to_ptr.vmem [resolvable:$true] %s421
      %s423 = sshll.u32 %s15, 4
      %s424 = int_to_ptr.hbm [resolvable:$true] %s423
      %429 = dma.vmem_to_hbm [thread:$0]  %s422, 256, %s424, [#allocation5], 128, 128, 8
    $region65: #{tpu_custom_call.1} parent=1 // pred_fallthru
      _
    // Predicated region
    $region66: #{tpu_custom_call.1} parent=1 // pred_check
      _
    $region67: #{tpu_custom_call.1} parent=1 // pred_check_branch
      %431 = sbr.rel (0) target = $region69
    $region68: #{tpu_custom_call.1} parent=1 // pred_region
      %433 = vsyncadd [#allocation8], 0
      %s435 = sshll.u32 [#allocation7], 4
      %s436 = int_to_ptr.vmem [resolvable:$true] %s435
      %s437 = sshll.u32 %s16, 4
      %s438 = int_to_ptr.hbm [resolvable:$true] %s437
      %440 = dma.vmem_to_hbm [thread:$0]  %s436, 16, %s438, [#allocation8]
    $region69: #{tpu_custom_call.1} parent=1 // pred_fallthru
      _
    // Predicated region
    $region70: #{tpu_custom_call.1} parent=1 // pred_check
      _
    $region71: #{tpu_custom_call.1} parent=1 // pred_check_branch
      %442 = sbr.rel (0) target = $region73
    $region72: #{tpu_custom_call.1} parent=1 // pred_region
      %444 = dma.done [#allocation3], 256
    $region73: #{tpu_custom_call.1} parent=1 // pred_fallthru
      _
    // Predicated region
    $region74: #{tpu_custom_call.1} parent=1 // pred_check
      _
    $region75: #{tpu_custom_call.1} parent=1 // pred_check_branch
      %446 = sbr.rel (0) target = $region77
    $region76: #{tpu_custom_call.1} parent=1 // pred_region
      %448 = dma.done [#allocation5], 64
    $region77: #{tpu_custom_call.1} parent=1 // pred_fallthru
      _
    // Predicated region
    $region78: #{tpu_custom_call.1} parent=1 // pred_check
      _
    $region79: #{tpu_custom_call.1} parent=1 // pred_check_branch
      %450 = sbr.rel (0) target = $region81
    $region80: #{tpu_custom_call.1} parent=1 // pred_region
      %452 = dma.done [#allocation5], 256
    $region81: #{tpu_custom_call.1} parent=1 // pred_fallthru
      _
    // Predicated region
    $region82: #{tpu_custom_call.1} parent=1 // pred_check
      _
    $region83: #{tpu_custom_call.1} parent=1 // pred_check_branch
      %454 = sbr.rel (0) target = $region85
    $region84: #{tpu_custom_call.1} parent=1 // pred_region
      %456 = dma.done [#allocation8], 16
    $region85: #{tpu_custom_call.1} parent=1 // pred_fallthru
      _
    %457 = vsyncpa [#allocation3], 1
    %458 = vsyncpa [#allocation5], 1
    %459 = vsyncpa [#allocation8], 1

</llo_original>
